<compile_context>
chip_gen: v5e
topology: v5e:2x2
jax: 0.10.0
libtpu: 0.0.40
codegen_flags: <defaults>
</compile_context>

<pallas_src>
import functools
import math

import jax
import jax.numpy as jnp
from jax.experimental import pallas as pl
from jax.experimental.pallas import tpu as pltpu

_LANES = 128
_SUBLANES = 8


def _round_up(n, m):
    return -(-n // m) * m


def _vmem_limit_bytes():
    """Generation-aware VMEM limit with headroom for Mosaic internal scratch."""
    try:
        cap = pltpu.get_tpu_info().vmem_capacity_bytes
    except Exception:
        cap = 64 * 1024 * 1024  # conservative (v7x per-TensorCore size)
    return min(int(cap * 3 // 4), 96 * 1024 * 1024)


def _popart_kernel(x_ref, w_ref, stats_ref, out_ref, norm_ref, *, out_f):
    x = x_ref[...]                                   # (tm, in_f)   f32 or bf16
    w = w_ref[...]                                   # (in_f, out_f_pad) same dtype
    # Canonical A[M,K] @ B[K,N] on the MXU with f32 accumulation.
    acc = jnp.dot(x, w, preferred_element_type=jnp.float32)   # (tm, out_f_pad)
    if acc.shape[1] != out_f:
        acc = acc[:, :out_f]                         # drop MXU lane padding
    bias = stats_ref[0:1, :]                         # (1, out_f) packed stats
    mu = stats_ref[1:2, :]
    sigma = stats_ref[2:3, :]
    normalized = acc + bias
    norm_ref[...] = normalized.astype(norm_ref.dtype)
    out_ref[...] = (normalized * sigma + mu).astype(out_ref.dtype)


def prepare_popart_params(weight, bias, mu, sigma, *, use_bf16_matmul=False):
    """One-time parameter prep (pad+transpose weight, pack bias/mu/sigma).

    weight: (out_f, in_f); bias/mu/sigma: (out_f,).  Cache the result and reuse
    it across forward calls — these are static-parameter transforms.
    """
    out_f, in_f = weight.shape
    out_f_pad = _round_up(out_f, _LANES)
    operand_dtype = jnp.bfloat16 if use_bf16_matmul else jnp.float32

    w = weight.astype(jnp.float32)
    if out_f_pad != out_f:
        w = jnp.pad(w, ((0, out_f_pad - out_f), (0, 0)))
    w_t = jnp.asarray(w.T, dtype=operand_dtype)      # (in_f, out_f_pad)

    stats = jnp.zeros((_SUBLANES, out_f), jnp.float32)
    stats = stats.at[0].set(bias.astype(jnp.float32))
    stats = stats.at[1].set(mu.astype(jnp.float32))
    stats = stats.at[2].set(sigma.astype(jnp.float32))

    return {
        "w_t": w_t,
        "stats": stats,
        "in_f": in_f,
        "out_f": out_f,
        "out_f_pad": out_f_pad,
        "operand_dtype": operand_dtype,
    }


def _xla_forward(inputs, w_t, stats, out_f):
    x32 = inputs.astype(jnp.float32)
    normalized = jnp.dot(x32, w_t.astype(jnp.float32))[:, :out_f] + stats[0][None, :]
    output = normalized * stats[2][None, :] + stats[1][None, :]
    return [output, normalized]


def popart_forward_prepared(inputs, params):
    """Hot path: inputs (B, in_f) + prepared params -> [output, normalized]."""
    B, in_f = inputs.shape
    assert in_f == params["in_f"]
    out_f = params["out_f"]
    out_f_pad = params["out_f_pad"]
    w_t = params["w_t"]
    stats = params["stats"]
    op_dtype = params["operand_dtype"]

    x = inputs.astype(op_dtype)
    xbytes = jnp.dtype(op_dtype).itemsize
    row_align = 16 if xbytes == 2 else _SUBLANES     # bf16 sublane tile is (16,128)

    # ---- generation-aware VMEM budget -> batch tile size --------------------
    vmem_limit = _vmem_limit_bytes()
    block_budget = vmem_limit - (8 << 20)            # headroom for internal scratch
    w_bytes = 2 * in_f * out_f_pad * xbytes          # resident weight (dbl-buffered)
    stats_bytes = 2 * _SUBLANES * _round_up(out_f, _LANES) * 4
    in_f_lane = _round_up(in_f, _LANES)
    row_bytes = in_f_lane * xbytes + 2 * _round_up(out_f, _LANES) * 4
    avail = block_budget - w_bytes - stats_bytes
    if avail < 2 * row_bytes * row_align:
        # TODO(synk): K-reduction grid axis when the weight panel outgrows VMEM.
        return _xla_forward(inputs, w_t, stats, out_f)

    tm = avail // (2 * row_bytes)
    tm = min(tm, 1024)
    b_pad8 = _round_up(B, row_align)
    tm = min(tm, b_pad8)
    tm = max(row_align, (tm // row_align) * row_align)
    # v7x has 2 TensorCores: give the "parallel" batch axis >=2 steps when possible.
    if b_pad8 // tm < 2 and b_pad8 >= 2 * row_align:
        tm = _round_up(-(-b_pad8 // 2), row_align)
    b_pad = _round_up(b_pad8, tm)
    if b_pad != B:
        x = jnp.pad(x, ((0, b_pad - B), (0, 0)))
    grid = (b_pad // tm,)

    out_shapes = (
        jax.ShapeDtypeStruct((b_pad, out_f), jnp.float32),   # output
        jax.ShapeDtypeStruct((b_pad, out_f), jnp.float32),   # normalized_output
    )
    kernel = functools.partial(_popart_kernel, out_f=out_f)

    output_p, normalized_p = pl.pallas_call(
        kernel,
        out_shape=out_shapes,
        grid=grid,
        in_specs=[
            pl.BlockSpec((tm, in_f), lambda i: (i, 0)),            # batch-tiled x
            pl.BlockSpec((in_f, out_f_pad), lambda i: (0, 0)),     # resident weight.T
            pl.BlockSpec((_SUBLANES, out_f), lambda i: (0, 0)),    # resident stats
        ],
        out_specs=(
            pl.BlockSpec((tm, out_f), lambda i: (i, 0)),
            pl.BlockSpec((tm, out_f), lambda i: (i, 0)),
        ),
        compiler_params=pltpu.CompilerParams(
            dimension_semantics=("parallel",),
            vmem_limit_bytes=vmem_limit,
        ),
    )(x, w_t, stats)

    if b_pad != B:
        output_p = output_p[:B]
        normalized_p = normalized_p[:B]
    return [output_p, normalized_p]


def popart_forward(inputs, weight, bias, mu, sigma, *,
                   use_bf16_matmul=False, force_kernel=False):
    """Convenience wrapper: inputs (B, in_f); weight (out_f, in_f); vectors (out_f,)."""
    B, in_f = inputs.shape
    out_f = weight.shape[0]
    # Traffic-based tiny-problem dispatch (kernel launch overhead dominates).
    if not force_kernel and B * (in_f + 2 * out_f) <= 16384:
        x32 = inputs.astype(jnp.float32)
        normalized = x32 @ weight.astype(jnp.float32).T + bias.astype(jnp.float32)[None, :]
        output = normalized * sigma[None, :] + mu[None, :]
        return [output, normalized]
    # TODO(synk): callers on a hot path should cache prepare_popart_params().
    prep = prepare_popart_params(weight, bias, mu, sigma,
                                 use_bf16_matmul=use_bf16_matmul)
    return popart_forward_prepared(inputs, prep)


def init_popart_params(key, input_features, output_features):
    """Deterministic init mirroring PopArtLayer.reset_parameters."""
    k_w, k_b = jax.random.split(key)
    # kaiming_uniform_(a=sqrt(5)) on (out, in) => uniform(-1/sqrt(fan_in), 1/sqrt(fan_in))
    bound = 1.0 / math.sqrt(input_features)
    weight = jax.random.uniform(
        k_w, (output_features, input_features), jnp.float32, -bound, bound)
    bias = jax.random.uniform(k_b, (output_features,), jnp.float32, -bound, bound)
    mu = jnp.zeros((output_features,), jnp.float32)
    sigma = jnp.ones((output_features,), jnp.float32)
    return weight, bias, mu, sigma


if __name__ == "__main__":
    key = jax.random.PRNGKey(0)
    k_init, k_x, k_mu, k_sig = jax.random.split(key, 4)

    batch = 8
    input_features = 32
    output_features = 16

    weight, bias, mu, sigma = init_popart_params(k_init, input_features, output_features)
    # Non-trivial statistics so output != normalized_output.
    mu = jax.random.normal(k_mu, (output_features,), jnp.float32)
    sigma = jnp.abs(jax.random.normal(k_sig, (output_features,), jnp.float32)) + 0.5

    x = jax.random.normal(k_x, (batch, input_features), jnp.float32)

    # Reference (same math as the torch forward), f32.
    norm_ref = x @ weight.T + bias[None, :]
    out_ref = norm_ref * sigma[None, :] + mu[None, :]

    # 1) f32 kernel path (prepared params -> Pallas, even at demo size).
    prep_f32 = prepare_popart_params(weight, bias, mu, sigma, use_bf16_matmul=False)
    output, normalized = popart_forward_prepared(x, prep_f32)
    jax.block_until_ready(output)
    jax.block_until_ready(normalized)
    assert output.shape == (batch, output_features)
    assert normalized.shape == (batch, output_features)
    assert jnp.allclose(normalized, norm_ref, atol=1e-5, rtol=1e-5)
    assert jnp.allclose(output, out_ref, atol=1e-5, rtol=1e-5)

    # 2) bf16-fed MXU path (f32 accumulation) — looser tolerance.
    prep_bf16 = prepare_popart_params(weight, bias, mu, sigma, use_bf16_matmul=True)
    output_bf, normalized_bf = popart_forward_prepared(x, prep_bf16)
    jax.block_until_ready(output_bf)
    assert jnp.allclose(normalized_bf, norm_ref, atol=5e-2, rtol=5e-2)
    assert jnp.allclose(output_bf, out_ref, atol=5e-2, rtol=5e-2)

    # 3) auto-dispatch convenience path (tiny shape -> fused XLA), exact match.
    output_auto, normalized_auto = popart_forward(x, weight, bias, mu, sigma)
    jax.block_until_ready(output_auto)
    assert jnp.allclose(normalized_auto, norm_ref, atol=1e-5, rtol=1e-5)
    assert jnp.allclose(output_auto, out_ref, atol=1e-5, rtol=1e-5)

    print("KERNEL_OK")
</pallas_src>

<mosaic_0001>
module attributes {stable_mosaic.version = 11 : i64} {
  func.func @_popart_kernel(%arg0: i32, %arg1: memref<8x32xf32, #tpu.memory_space<vmem>>, %arg2: memref<32x128xf32, #tpu.memory_space<vmem>>, %arg3: memref<8x16xf32, #tpu.memory_space<vmem>>, %arg4: memref<8x16xf32, #tpu.memory_space<vmem>>, %arg5: memref<8x16xf32, #tpu.memory_space<vmem>>) attributes {dimension_semantics = [#tpu.dimension_semantics<parallel>], iteration_bounds = array<i64: 1>, scalar_prefetch = 0 : i64, scratch_operands = 0 : i64, tpu.core_type = #tpu.core_type<tc>, window_params = [{transform_indices = @transform_0, window_bounds = array<i64: 8, 32>}, {pipeline_mode = #tpu.pipeline_mode<synchronous>, transform_indices = @transform_1, window_bounds = array<i64: 32, 128>}, {pipeline_mode = #tpu.pipeline_mode<synchronous>, transform_indices = @transform_2, window_bounds = array<i64: 8, 16>}, {transform_indices = @transform_3, window_bounds = array<i64: 8, 16>}, {transform_indices = @transform_4, window_bounds = array<i64: 8, 16>}]} {
    %c0 = arith.constant 0 : index
    %c0_0 = arith.constant 0 : index
    %0 = vector.load %arg1[%c0, %c0_0] : memref<8x32xf32, #tpu.memory_space<vmem>>, vector<8x32xf32>
    %c0_1 = arith.constant 0 : index
    %c0_2 = arith.constant 0 : index
    %1 = vector.load %arg2[%c0_1, %c0_2] : memref<32x128xf32, #tpu.memory_space<vmem>>, vector<32x128xf32>
    %cst = arith.constant dense<0.000000e+00> : vector<8x128xf32>
    %2 = tpu.matmul %0, %1, %cst {dimension_numbers = #tpu.dot_dimension_numbers<[1], [0], [0], [1], [0, 0, 1, 1], [], []>} : vector<8x32xf32>, vector<32x128xf32>, vector<8x128xf32> -> vector<8x128xf32>
    %3 = vector.extract_strided_slice %2 {offsets = [0, 0], sizes = [8, 16], strides = [1, 1]} : vector<8x128xf32> to vector<8x16xf32>
    %c0_3 = arith.constant 0 : index
    %c0_4 = arith.constant 0 : index
    %4 = vector.load %arg3[%c0_3, %c0_4] : memref<8x16xf32, #tpu.memory_space<vmem>>, vector<1x16xf32>
    %c1 = arith.constant 1 : index
    %c0_5 = arith.constant 0 : index
    %5 = vector.load %arg3[%c1, %c0_5] : memref<8x16xf32, #tpu.memory_space<vmem>>, vector<1x16xf32>
    %c2 = arith.constant 2 : index
    %c0_6 = arith.constant 0 : index
    %6 = vector.load %arg3[%c2, %c0_6] : memref<8x16xf32, #tpu.memory_space<vmem>>, vector<1x16xf32>
    %7 = vector.broadcast %4 : vector<1x16xf32> to vector<8x16xf32>
    %8 = arith.addf %3, %7 : vector<8x16xf32>
    %c0_7 = arith.constant 0 : index
    %c0_8 = arith.constant 0 : index
    %9 = vector.load %arg5[%c0_7, %c0_8] : memref<8x16xf32, #tpu.memory_space<vmem>>, vector<8x16xf32>
    tpu.vector_store %arg5[%c0_7, %c0_8], %8 {strides = array<i32>} : memref<8x16xf32, #tpu.memory_space<vmem>>, vector<8x16xf32>,
    %10 = vector.broadcast %6 : vector<1x16xf32> to vector<8x16xf32>
    %11 = arith.mulf %8, %10 : vector<8x16xf32>
    %12 = vector.broadcast %5 : vector<1x16xf32> to vector<8x16xf32>
    %13 = arith.addf %11, %12 : vector<8x16xf32>
    %c0_9 = arith.constant 0 : index
    %c0_10 = arith.constant 0 : index
    %14 = vector.load %arg4[%c0_9, %c0_10] : memref<8x16xf32, #tpu.memory_space<vmem>>, vector<8x16xf32>
    tpu.vector_store %arg4[%c0_9, %c0_10], %13 {strides = array<i32>} : memref<8x16xf32, #tpu.memory_space<vmem>>, vector<8x16xf32>,
    return
  }
  func.func @transform_0(%arg0: i32) -> (i32, i32) {
    %c0_i32 = arith.constant 0 : i32
    %c0_i32_0 = arith.constant 0 : i32
    return %arg0, %c0_i32 : i32, i32
  }
  func.func @transform_1(%arg0: i32) -> (i32, i32) {
    %c0_i32 = arith.constant 0 : i32
    %c0_i32_0 = arith.constant 0 : i32
    %c0_i32_1 = arith.constant 0 : i32
    return %c0_i32, %c0_i32_0 : i32, i32
  }
  func.func @transform_2(%arg0: i32) -> (i32, i32) {
    %c0_i32 = arith.constant 0 : i32
    %c0_i32_0 = arith.constant 0 : i32
    %c0_i32_1 = arith.constant 0 : i32
    return %c0_i32, %c0_i32_0 : i32, i32
  }
  func.func @transform_3(%arg0: i32) -> (i32, i32) {
    %c0_i32 = arith.constant 0 : i32
    %c0_i32_0 = arith.constant 0 : i32
    return %arg0, %c0_i32 : i32, i32
  }
  func.func @transform_4(%arg0: i32) -> (i32, i32) {
    %c0_i32 = arith.constant 0 : i32
    %c0_i32_0 = arith.constant 0 : i32
    return %arg0, %c0_i32 : i32, i32
  }
}

</mosaic_0001>

<llo_original>
// kernel: tpu_custom_call.1
$region0: #{tpu_custom_call.1}
  #allocation0 [shape = 'u32[]', space=smem, size = 0x4, offset = 0x4, fixed_abs, tag = 'smem constant byte address 0x4 - core index']
  #allocation1 [shape = 'u32[72,128]{1,0:T(1,128)}', space=vmem, size = 0x9000, scoped, tag = 'internal scratch']
  %s0 = inlined_call_operand.hbm [shape: f32[8,32], index: 0, kind: input, shape index: {}]
  %s1 = inlined_call_operand.hbm [shape: f32[32,128], index: 1, kind: input, shape index: {}]
  %s2 = inlined_call_operand.hbm [shape: f32[8,16], index: 2, kind: input, shape index: {}]
  %s3 = inlined_call_operand.hbm [shape: f32[8,16], index: 3, kind: output, shape index: {0}]
  %s4 = inlined_call_operand.hbm [shape: f32[8,16], index: 4, kind: output, shape index: {1}]
  %5 = xla_tuple %s3, %s4
  %s6 = sld [smem:[#allocation0]]
  $region42: #{tpu_custom_call.1} parent=0
    _
  %s8 = ssub.s32 1, %s6
  %s9 = scalar_select 0, %s8, %s6
  $region1: #{tpu_custom_call.1} parent=0
    #allocation2 [shape = 'u8[4096]{0}', space=vmem, size = 0x1000, scoped, tag = 'input window, operand 0, single buffered']
    #allocation3 [shape = 's32[1]{0}', space=sflag, size = 0x4, scoped, tag = 'scoped memory for tpu_custom_call.1']
    #allocation4 [shape = 's32[1]{0}', space=sflag, size = 0x4, scoped, tag = 'scoped memory for tpu_custom_call.1']
    #allocation5 [shape = 'u8[16384]{0}', space=vmem, size = 0x4000, scoped, tag = 'input window, operand 1, single buffered']
    #allocation6 [shape = 's32[1]{0}', space=sflag, size = 0x4, scoped, tag = 'scoped memory for tpu_custom_call.1']
    #allocation7 [shape = 'u8[4096]{0}', space=vmem, size = 0x1000, scoped, tag = 'input window, operand 2, single buffered']
    #allocation8 [shape = 'u8[4096]{0}', space=vmem, size = 0x1000, scoped, tag = 'output window, operand 0, single buffered']
    #allocation9 [shape = 'u8[4096]{0}', space=vmem, size = 0x1000, scoped, tag = 'output window, operand 1, single buffered']
    #allocation10 [shape = 's32[1]{0}', space=sflag, size = 0x4, scoped, tag = 'scoped memory for tpu_custom_call.1']
    %10 = vsyncpa [#allocation3], 0
    %11 = vsyncpa [#allocation6], 0
    %12 = vsyncpa [#allocation4], 0
    %13 = vsyncpa [#allocation10], 0
    // Predicated region
    $region2: #{tpu_custom_call.1} parent=1 // pred_check
      _
    $region3: #{tpu_custom_call.1} parent=1 // pred_check_branch
      %15 = sbr.rel (0) target = $region5
    $region4: #{tpu_custom_call.1} parent=1 // pred_region
      %17 = vsyncadd [#allocation3], 0
      %s19 = sshll.u32 %s0, 4
      %s20 = int_to_ptr.hbm [resolvable:$true] %s19
      %s21 = sshll.u32 [#allocation2], 4
      %s22 = int_to_ptr.vmem [resolvable:$true] %s21
      %24 = dma.hbm_to_vmem [thread:$0]  %s20, 128, %s22, [#allocation3]
    $region5: #{tpu_custom_call.1} parent=1 // pred_fallthru
      _
    // Predicated region
    $region6: #{tpu_custom_call.1} parent=1 // pred_check
      _
    $region7: #{tpu_custom_call.1} parent=1 // pred_check_branch
      %26 = sbr.rel (0) target = $region9
    $region8: #{tpu_custom_call.1} parent=1 // pred_region
      %28 = vsyncadd [#allocation6], 0
      %s29 = sshll.u32 %s1, 4
      %s30 = int_to_ptr.hbm [resolvable:$true] %s29
      %s31 = sshll.u32 [#allocation5], 4
      %s32 = int_to_ptr.vmem [resolvable:$true] %s31
      %37 = dma.hbm_to_vmem [thread:$0]  %s30, 512, %s32, [#allocation6], 128, 128, 8
    $region9: #{tpu_custom_call.1} parent=1 // pred_fallthru
      _
    // Predicated region
    $region10: #{tpu_custom_call.1} parent=1 // pred_check
      _
    $region11: #{tpu_custom_call.1} parent=1 // pred_check_branch
      %39 = sbr.rel (0) target = $region13
    $region12: #{tpu_custom_call.1} parent=1 // pred_region
      %41 = vsyncadd [#allocation6], 0
      %s43 = sshll.u32 %s2, 4
      %s44 = int_to_ptr.hbm [resolvable:$true] %s43
      %s45 = sshll.u32 [#allocation7], 4
      %s46 = int_to_ptr.vmem [resolvable:$true] %s45
      %48 = dma.hbm_to_vmem [thread:$0]  %s44, 128, %s46, [#allocation6]
    $region13: #{tpu_custom_call.1} parent=1 // pred_fallthru
      _
    // Predicated region
    $region14: #{tpu_custom_call.1} parent=1 // pred_check
      _
    $region15: #{tpu_custom_call.1} parent=1 // pred_check_branch
      %50 = sbr.rel (0) target = $region17
    $region16: #{tpu_custom_call.1} parent=1 // pred_region
      %52 = dma.done [#allocation3], 128
    $region17: #{tpu_custom_call.1} parent=1 // pred_fallthru
      _
    // Predicated region
    $region18: #{tpu_custom_call.1} parent=1 // pred_check
      _
    $region19: #{tpu_custom_call.1} parent=1 // pred_check_branch
      %54 = sbr.rel (0) target = $region21
    $region20: #{tpu_custom_call.1} parent=1 // pred_region
      %56 = dma.done [#allocation6], 512
    $region21: #{tpu_custom_call.1} parent=1 // pred_fallthru
      _
    // Predicated region
    $region22: #{tpu_custom_call.1} parent=1 // pred_check
      _
    $region23: #{tpu_custom_call.1} parent=1 // pred_check_branch
      %58 = sbr.rel (0) target = $region25
    $region24: #{tpu_custom_call.1} parent=1 // pred_region
      %60 = dma.done [#allocation6], 128
    $region25: #{tpu_custom_call.1} parent=1 // pred_fallthru
      _
    %v61 = vld [vmem:[#allocation2] sm:$0xff]
    %v62 = vld [vmem:[#allocation5] sm:$0xff]
    %v63 = vld [vmem:[#allocation5 + $0x8] sm:$0xff]
    %v64 = vld [vmem:[#allocation5 + $0x10] sm:$0xff]
    %v65 = vld [vmem:[#allocation5 + $0x18] sm:$0xff]
    %vm66 = vcmask 261120
    %v68 = vsel %vm66, %v61, 0
    %70 = vmatpush.msra.mxu0 0.0
    %71 = vmatpush.msra.mxu0 0.0
    %72 = vmatpush.msra.mxu0 0.0
    %73 = vmatpush.msra.mxu0 0.0
    %74 = vmatpush.msra.mxu0 0.0
    %75 = vmatpush.msra.mxu0 0.0
    %76 = vmatpush.msra.mxu0 0.0
    %77 = vmatpush.msra.mxu0 0.0
    %78 = vmatpush.msra.mxu0 0.0
    %79 = vmatpush.msra.mxu0 0.0
    %80 = vmatpush.msra.mxu0 0.0
    %81 = vmatpush.msra.mxu0 0.0
    %82 = vmatpush.msra.mxu0 %v65
    %83 = vmatpush.msra.mxu0 %v64
    %84 = vmatpush.msra.mxu0 %v63
    %85 = vmatpush.msra.mxu0 %v62
    %86 = vmatmul.f32.gmra.mxu0 %v68
    %v87 = vpop.f32.mrf.mxu0
    %v88 = vadd.f32 0.0, %v87
    %89 = vdwg.mxu0
    %v90 = vld [vmem:[#allocation7] sm:$0x1]
    %v91 = vld [vmem:[#allocation7 + $0x1] sm:$0x1]
    %v92 = vld [vmem:[#allocation7 + $0x2] sm:$0x1]
    %v93 = vperm.slane %v90, 0
    %v94 = vadd.f32 %v88, %v93
    %vm95 = vcmask 130048
    %96 = vst.msk [vmem:[#allocation9] sm:$0xff] %vm95, %v94
    %v97 = vperm.slane %v92, 0
    %v98 = vmul.f32 %v94, %v97
    %v99 = vperm.slane %v91, 0
    %v100 = vadd.f32 %v98, %v99
    %101 = vst.msk [vmem:[#allocation8] sm:$0xff] %vm95, %v100
    // Predicated region
    $region26: #{tpu_custom_call.1} parent=1 // pred_check
      _
    $region27: #{tpu_custom_call.1} parent=1 // pred_check_branch
      %103 = sbr.rel (0) target = $region29
    $region28: #{tpu_custom_call.1} parent=1 // pred_region
      %105 = vsyncadd [#allocation4], 0
      %s107 = sshll.u32 [#allocation8], 4
      %s108 = int_to_ptr.vmem [resolvable:$true] %s107
      %s109 = sshll.u32 %s3, 4
      %s110 = int_to_ptr.hbm [resolvable:$true] %s109
      %112 = dma.vmem_to_hbm [thread:$0]  %s108, 128, %s110, [#allocation4]
    $region29: #{tpu_custom_call.1} parent=1 // pred_fallthru
      _
    // Predicated region
    $region30: #{tpu_custom_call.1} parent=1 // pred_check
      _
    $region31: #{tpu_custom_call.1} parent=1 // pred_check_branch
      %114 = sbr.rel (0) target = $region33
    $region32: #{tpu_custom_call.1} parent=1 // pred_region
      %116 = vsyncadd [#allocation10], 0
      %s118 = sshll.u32 [#allocation9], 4
      %s119 = int_to_ptr.vmem [resolvable:$true] %s118
      %s120 = sshll.u32 %s4, 4
      %s121 = int_to_ptr.hbm [resolvable:$true] %s120
      %123 = dma.vmem_to_hbm [thread:$0]  %s119, 128, %s121, [#allocation10]
    $region33: #{tpu_custom_call.1} parent=1 // pred_fallthru
      _
    // Predicated region
    $region34: #{tpu_custom_call.1} parent=1 // pred_check
      _
    $region35: #{tpu_custom_call.1} parent=1 // pred_check_branch
      %125 = sbr.rel (0) target = $region37
    $region36: #{tpu_custom_call.1} parent=1 // pred_region
      %127 = dma.done [#allocation4], 128
    $region37: #{tpu_custom_call.1} parent=1 // pred_fallthru
      _
    // Predicated region
    $region38: #{tpu_custom_call.1} parent=1 // pred_check
      _
    $region39: #{tpu_custom_call.1} parent=1 // pred_check_branch
      %129 = sbr.rel (0) target = $region41
    $region40: #{tpu_custom_call.1} parent=1 // pred_region
      %131 = dma.done [#allocation10], 128
    $region41: #{tpu_custom_call.1} parent=1 // pred_fallthru
      _
    %132 = vsyncpa [#allocation3], 1
    %133 = vsyncpa [#allocation6], 1
    %134 = vsyncpa [#allocation4], 1
    %135 = vsyncpa [#allocation10], 1

</llo_original>
